<compile_context>
chip_gen: v7x
topology: tpu7x:2x2x1
jax: 0.10.0
libtpu: 0.0.40
codegen_flags: <defaults>
</compile_context>

<pallas_src>
import jax
import jax.numpy as jnp
from jax import lax
from jax.experimental import pallas as pl
from jax.experimental.pallas import tpu as pltpu


def self_attention_kernel(wqkv_ref, x_ref, wl_ref, bl_ref, o_ref):
    S = wqkv_ref.shape[1]               # static python int

    X = x_ref[...]                      # (S, N)  — this grid step's example
    Wqkv = wqkv_ref[...]                # (3S, S) — VMEM-resident fused weight

    # One fused projection matmul instead of three.
    QKV = jnp.dot(Wqkv, X, preferred_element_type=jnp.float32)   # (3S, N)
    Q = QKV[0 * S:1 * S]                # (S, N) — static, sublane-aligned slices
    K = QKV[1 * S:2 * S]                # (S, N)
    V = QKV[2 * S:3 * S]                # (S, N)

    # A = K.T @ Q as a transposed-LHS contraction (no explicit transpose op):
    # contract dim 0 of K with dim 0 of Q -> (N, N).
    A = lax.dot_general(K, Q, (((0,), (0,)), ((), ())),
                        preferred_element_type=jnp.float32)      # (N, N)

    # softmax over dim=0 (each column of A sums to 1) == F.softmax(A, dim=0)
    m = jnp.max(A, axis=0, keepdims=True)
    e = jnp.exp(A - m)
    A1 = e / jnp.sum(e, axis=0, keepdims=True)                   # (N, N)

    # O = V @ A1 on the MXU; the final Linear(10, 1) is a VPU broadcast-mul
    # + lane reduce (avoids a second serially-dependent MXU matvec).
    O = jnp.dot(V, A1, preferred_element_type=jnp.float32)       # (S, N)
    Wl = wl_ref[...]                                             # (1, N)
    y = jnp.sum(O * Wl, axis=-1, keepdims=True) + bl_ref[0, 0]   # (S, 1)

    o_ref[...] = y


def init_self_attention_params(key, size, n_feat=10):
    """Creates PyTorch-equivalent parameters.

    The (3S, S) fused QKV weight is built ONCE here (hoisted out of the
    per-call forward path, per the performance review)."""
    k_q, k_k, k_v, k_w, k_b = jax.random.split(key, 5)
    W_q = jax.random.normal(k_q, (size, size), dtype=jnp.float32)
    W_k = jax.random.normal(k_k, (size, size), dtype=jnp.float32)
    W_v = jax.random.normal(k_v, (size, size), dtype=jnp.float32)
    # torch.nn.Linear(10, 1): weight (1, 10), bias (1,), U(-1/sqrt(10), 1/sqrt(10))
    lim = 1.0 / jnp.sqrt(jnp.float32(n_feat))
    W_lin = jax.random.uniform(k_w, (1, n_feat), dtype=jnp.float32,
                               minval=-lim, maxval=lim)
    b_lin = jax.random.uniform(k_b, (1,), dtype=jnp.float32,
                               minval=-lim, maxval=lim)

    params = {
        "W_qkv": jnp.concatenate([W_q, W_k, W_v], axis=0),   # (3S, S), built once
        "W_lin": W_lin,                                      # (1, N)
        "b_lin": b_lin.reshape(1, 1),                        # (1, 1) -> SMEM scalar
    }
    raw = {"W_q": W_q, "W_k": W_k, "W_v": W_v, "W_lin": W_lin, "b_lin": b_lin}
    return params, raw


@jax.jit
def self_attention_forward_batched(params, X_batch):
    """Applies the module to a batch of X's: (B, S, N) -> (B, S, 1)."""
    B, S, N = X_batch.shape
    vmem_resident = pl.BlockSpec((3 * S, S), lambda b: (0, 0))       # DMA'd once
    x_spec = pl.BlockSpec((None, S, N), lambda b: (b, 0, 0))         # per-step
    wl_spec = pl.BlockSpec((1, N), lambda b: (0, 0))                 # DMA'd once
    bias_spec = pl.BlockSpec(memory_space=pltpu.MemorySpace.SMEM)    # SMEM scalar
    out_spec = pl.BlockSpec((None, S, 1), lambda b: (b, 0, 0))

    return pl.pallas_call(
        self_attention_kernel,
        out_shape=jax.ShapeDtypeStruct((B, S, 1), jnp.float32),
        grid=(B,),
        in_specs=[vmem_resident, x_spec, wl_spec, bias_spec],
        out_specs=out_spec,
        compiler_params=pltpu.CompilerParams(
            dimension_semantics=("parallel",)),   # shard batch across TCs (v7x)
    )(params["W_qkv"], X_batch, params["W_lin"], params["b_lin"])


def self_attention_forward(params, X):
    """Single-example forward, matching the PyTorch module signature: (S, N) -> (S, 1)."""
    return self_attention_forward_batched(params, X[None])[0]


def reference_forward(raw, X):
    Q = raw["W_q"] @ X
    K = raw["W_k"] @ X
    V = raw["W_v"] @ X
    A = K.T @ Q
    A1 = jax.nn.softmax(A, axis=0)
    O = V @ A1
    return O @ raw["W_lin"].T + raw["b_lin"][None, :]


if __name__ == "__main__":
    size = 16          # "size" in the PyTorch module
    n = 10             # feature count fixed by Linear(10, 1)
    batch = 8          # small batch to exercise the grid / weight residency

    key = jax.random.PRNGKey(0)
    k_params, k_x = jax.random.split(key)
    params, raw = init_self_attention_params(k_params, size, n)
    X_batch = jax.random.normal(k_x, (batch, size, n), dtype=jnp.float32)

    # Batched kernel run.
    y = self_attention_forward_batched(params, X_batch)
    y = jax.block_until_ready(y)
    assert y.shape == (batch, size, 1)

    y_ref = jax.vmap(lambda x: reference_forward(raw, x))(X_batch)
    assert jnp.allclose(y, y_ref, atol=1e-4, rtol=1e-4), "batched mismatch vs reference"

    # Single-example path (PyTorch-module signature parity).
    y1 = jax.block_until_ready(self_attention_forward(params, X_batch[0]))
    assert y1.shape == (size, 1)
    assert jnp.allclose(y1, y_ref[0], atol=1e-4, rtol=1e-4), "single mismatch vs reference"

    print("KERNEL_OK")
</pallas_src>

<mosaic_0001>
module attributes {stable_mosaic.version = 11 : i64} {
  func.func @self_attention_kernel(%arg0: i32, %arg1: memref<48x16xf32, #tpu.memory_space<vmem>>, %arg2: memref<1x16x10xf32, #tpu.memory_space<vmem>>, %arg3: memref<1x10xf32, #tpu.memory_space<vmem>>, %arg4: memref<1x1xf32, #tpu.memory_space<smem>>, %arg5: memref<1x16x1xf32, #tpu.memory_space<vmem>>) attributes {dimension_semantics = [#tpu.dimension_semantics<parallel>], iteration_bounds = array<i64: 8>, scalar_prefetch = 0 : i64, scratch_operands = 0 : i64, tpu.core_type = #tpu.core_type<tc>, window_params = [{pipeline_mode = #tpu.pipeline_mode<synchronous>, transform_indices = @transform_0, window_bounds = array<i64: 48, 16>}, {transform_indices = @transform_1, window_bounds = array<i64: 1, 16, 10>}, {pipeline_mode = #tpu.pipeline_mode<synchronous>, transform_indices = @transform_2, window_bounds = array<i64: 1, 10>}, {transform_indices = @transform_3, window_bounds = array<i64: 1, 1>}, {transform_indices = @transform_4, window_bounds = array<i64: 1, 16, 1>}]} {
    %c0 = arith.constant 0 : index
    %c0_0 = arith.constant 0 : index
    %c0_1 = arith.constant 0 : index
    %0 = vector.load %arg2[%c0, %c0_0, %c0_1] : memref<1x16x10xf32, #tpu.memory_space<vmem>>, vector<1x16x10xf32>
    %1 = vector.shape_cast %0 : vector<1x16x10xf32> to vector<16x10xf32>
    %c0_2 = arith.constant 0 : index
    %c0_3 = arith.constant 0 : index
    %2 = vector.load %arg1[%c0_2, %c0_3] : memref<48x16xf32, #tpu.memory_space<vmem>>, vector<48x16xf32>
    %cst = arith.constant dense<0.000000e+00> : vector<48x10xf32>
    %3 = tpu.matmul %2, %1, %cst {dimension_numbers = #tpu.dot_dimension_numbers<[1], [0], [0], [1], [0, 0, 1, 1], [], []>} : vector<48x16xf32>, vector<16x10xf32>, vector<48x10xf32> -> vector<48x10xf32>
    %4 = vector.extract_strided_slice %3 {offsets = [0, 0], sizes = [16, 10], strides = [1, 1]} : vector<48x10xf32> to vector<16x10xf32>
    %5 = vector.extract_strided_slice %3 {offsets = [16, 0], sizes = [16, 10], strides = [1, 1]} : vector<48x10xf32> to vector<16x10xf32>
    %6 = vector.extract_strided_slice %3 {offsets = [32, 0], sizes = [16, 10], strides = [1, 1]} : vector<48x10xf32> to vector<16x10xf32>
    %cst_4 = arith.constant dense<0.000000e+00> : vector<10x10xf32>
    %7 = tpu.matmul %5, %4, %cst_4 {dimension_numbers = #tpu.dot_dimension_numbers<[0], [0], [1], [1], [0, 1, 1, 1], [], []>} : vector<16x10xf32>, vector<16x10xf32>, vector<10x10xf32> -> vector<10x10xf32>
    %cst_5 = arith.constant dense<0xFF800000> : vector<10xf32>
    %8 = vector.multi_reduction <maximumf>, %7, %cst_5 [0] : vector<10x10xf32> to vector<10xf32>
    %9 = vector.shape_cast %8 : vector<10xf32> to vector<1x10xf32>
    %10 = vector.broadcast %9 : vector<1x10xf32> to vector<10x10xf32>
    %11 = arith.subf %7, %10 : vector<10x10xf32>
    %12 = math.exp %11 : vector<10x10xf32>
    %cst_6 = arith.constant dense<0.000000e+00> : vector<10xf32>
    %13 = vector.multi_reduction <add>, %12, %cst_6 [0] : vector<10x10xf32> to vector<10xf32>
    %14 = vector.shape_cast %13 : vector<10xf32> to vector<1x10xf32>
    %15 = vector.broadcast %14 : vector<1x10xf32> to vector<10x10xf32>
    %16 = arith.divf %12, %15 : vector<10x10xf32>
    %cst_7 = arith.constant dense<0.000000e+00> : vector<16x10xf32>
    %17 = tpu.matmul %6, %16, %cst_7 {dimension_numbers = #tpu.dot_dimension_numbers<[1], [0], [0], [1], [0, 0, 1, 1], [], []>} : vector<16x10xf32>, vector<10x10xf32>, vector<16x10xf32> -> vector<16x10xf32>
    %c0_8 = arith.constant 0 : index
    %c0_9 = arith.constant 0 : index
    %18 = vector.load %arg3[%c0_8, %c0_9] : memref<1x10xf32, #tpu.memory_space<vmem>>, vector<1x10xf32>
    %19 = vector.broadcast %18 : vector<1x10xf32> to vector<16x10xf32>
    %20 = arith.mulf %17, %19 : vector<16x10xf32>
    %cst_10 = arith.constant dense<0.000000e+00> : vector<16xf32>
    %21 = vector.multi_reduction <add>, %20, %cst_10 [1] : vector<16x10xf32> to vector<16xf32>
    %22 = vector.shape_cast %21 : vector<16xf32> to vector<16x1xf32>
    %c0_11 = arith.constant 0 : index
    %c0_12 = arith.constant 0 : index
    %23 = memref.load %arg4[%c0_11, %c0_12] : memref<1x1xf32, #tpu.memory_space<smem>>
    %24 = vector.broadcast %23 : f32 to vector<16x1xf32>
    %25 = arith.addf %22, %24 : vector<16x1xf32>
    %c0_13 = arith.constant 0 : index
    %c0_14 = arith.constant 0 : index
    %c0_15 = arith.constant 0 : index
    %26 = vector.load %arg5[%c0_13, %c0_14, %c0_15] : memref<1x16x1xf32, #tpu.memory_space<vmem>>, vector<1x16x1xf32>
    %27 = vector.shape_cast %26 : vector<1x16x1xf32> to vector<16x1xf32>
    %28 = vector.shape_cast %25 : vector<16x1xf32> to vector<1x16x1xf32>
    tpu.vector_store %arg5[%c0_13, %c0_14, %c0_15], %28 {strides = array<i32>} : memref<1x16x1xf32, #tpu.memory_space<vmem>>, vector<1x16x1xf32>,
    return
  }
  func.func @transform_0(%arg0: i32) -> (i32, i32) {
    %c0_i32 = arith.constant 0 : i32
    %c0_i32_0 = arith.constant 0 : i32
    %c0_i32_1 = arith.constant 0 : i32
    return %c0_i32, %c0_i32_0 : i32, i32
  }
  func.func @transform_1(%arg0: i32) -> (i32, i32, i32) {
    %c0_i32 = arith.constant 0 : i32
    %c0_i32_0 = arith.constant 0 : i32
    %c0_i32_1 = arith.constant 0 : i32
    return %arg0, %c0_i32, %c0_i32_0 : i32, i32, i32
  }
  func.func @transform_2(%arg0: i32) -> (i32, i32) {
    %c0_i32 = arith.constant 0 : i32
    %c0_i32_0 = arith.constant 0 : i32
    %c0_i32_1 = arith.constant 0 : i32
    return %c0_i32, %c0_i32_0 : i32, i32
  }
  func.func @transform_3(%arg0: i32) -> (i32, i32) {
    %c0_i32 = arith.constant 0 : i32
    %c0_i32_0 = arith.constant 0 : i32
    %c0_i32_1 = arith.constant 0 : i32
    return %c0_i32, %c0_i32_0 : i32, i32
  }
  func.func @transform_4(%arg0: i32) -> (i32, i32, i32) {
    %c0_i32 = arith.constant 0 : i32
    %c0_i32_0 = arith.constant 0 : i32
    %c0_i32_1 = arith.constant 0 : i32
    return %arg0, %c0_i32, %c0_i32_0 : i32, i32, i32
  }
}

</mosaic_0001>

<llo_original>
// kernel: self_attention_forward_batched.1
$region0: #{self_attention_forward_batched.1}
  #allocation0 [shape = 'u32[]', space=smem, size = 0x4, offset = 0x4, fixed_abs, tag = 'smem constant byte address 0x4 - core index']
  #allocation1 [shape = 'u32[144,128]{1,0:T(1,128)}', space=vmem, size = 0x12000, scoped, tag = 'internal scratch']
  #allocation2 [shape = 'f32[1,1]{1,0:T(1,128)S(6)}', space=smem, size = 0x200, scoped, tag = 'scoped memory for self_attention_forward_batched.1']
  %s0 = inlined_call_operand.vmem [shape: f32[48,16], index: 0, kind: input, shape index: {}]
  %s1 = inlined_call_operand.vmem [shape: f32[8,16,10], index: 1, kind: input, shape index: {}]
  %s2 = inlined_call_operand.vmem [shape: f32[1,10], index: 2, kind: input, shape index: {}]
  %s3 = inlined_call_operand.<no memory space> [shape: f32[1,1], index: 3, kind: input, shape index: {}]
  %s4 = inlined_call_operand.vmem [shape: f32[8,16,1], index: 4, kind: output, shape index: {}]
  %s5 = sld [smem:[#allocation0]]
  $region49: #{self_attention_forward_batched.1} parent=0
    _
  %s7 = ssub.s32 1, %s5
  %s8 = scalar_select 0, %s7, %s5
  %9 = sst [smem:[#allocation2]] %s3
  loop: start=0, step=1, limit=10
  $region2: #{self_attention_forward_batched.1} parent=0 // loop_pre_header
    _
  $region3: #{self_attention_forward_batched.1} parent=0 // loop_header
    %s11 = sphi 0, %s15
    %p12 = scmp.ge.s32.totalorder %s11, 10
    %s19 = sphi 0, %s19
    %s21 = sphi 0, %s19
    %s22 = sphi 0, %s21
    %s36 = sphi 0, %s22
    %s42 = sphi 0, %s44
    %s45 = sphi 0, %s42
    %s46 = sphi 0, %s45
    %s62 = sphi 0, %s46
    %s66 = sphi 0, %s66
    %s68 = sphi 0, %s66
    %s69 = sphi 0, %s68
    %s83 = sphi 0, %s69
    %s87 = sphi 0, %s87
    %s89 = sphi 0, %s87
    %s90 = sphi 0, %s89
    %s104 = sphi 0, %s90
    %s110 = sphi 0, %s112
    %s113 = sphi 0, %s110
    %s114 = sphi 0, %s113
    %s130 = sphi 0, %s114
  $region4: #{self_attention_forward_batched.1} parent=0 // loop_header_branch
    %14 = sbr.rel (%p12) target = $region8
  $region5: #{self_attention_forward_batched.1} parent=0 // loop_body
    %s16 = ssub.s32 %s11, 1
    %s17 = ssub.s32 %s11, 2
    %s18 = sadd.s32 %s11, 1
    %s20 = sadd.s32 %s19, 1
    %p23 = scmp.eq.s32.totalorder %s11, 7
    %p24 = scmp.ne.s32.totalorder %s19, %s21
    %p25 = scmp.eq.s32.totalorder %s11, 0
    %p26 = por %p24, %p25
    %p27 = scmp.ne.s32.totalorder %s19, %s21
    %p28 = scmp.eq.s32.totalorder %s16, 7
    %p29 = por %p27, %p28
    %p30 = scmp.ne.s32.totalorder %s21, %s22
    %p31 = scmp.eq.s32.totalorder %s16, 0
    %p32 = por %p30, %p31
    %p33 = scmp.ne.s32.totalorder %s21, %s22
    %p34 = scmp.eq.s32.totalorder %s17, 7
    %p35 = por %p33, %p34
    %p37 = scmp.ne.s32.totalorder %s22, %s36
    %p38 = scmp.eq.s32.totalorder %s17, 0
    %p39 = por %p37, %p38
    %s40 = ssub.s32 %s11, %s18
    %p41 = scmp.eq.s32.totalorder %s40, 0
    %s43 = sadd.s32 %s42, 1
    %s44 = scalar_select %p41, %s42, %s43
    %p47 = pneg %p41
    %p48 = scmp.eq.s32.totalorder %s11, 7
    %p49 = por %p47, %p48
    %p50 = scmp.ne.s32.totalorder %s42, %s45
    %p51 = scmp.eq.s32.totalorder %s11, 0
    %p52 = por %p50, %p51
    %p53 = scmp.ne.s32.totalorder %s42, %s45
    %p54 = scmp.eq.s32.totalorder %s16, 7
    %p55 = por %p53, %p54
    %p56 = scmp.ne.s32.totalorder %s45, %s46
    %p57 = scmp.eq.s32.totalorder %s16, 0
    %p58 = por %p56, %p57
    %p59 = scmp.ne.s32.totalorder %s45, %s46
    %p60 = scmp.eq.s32.totalorder %s17, 7
    %p61 = por %p59, %p60
    %p63 = scmp.ne.s32.totalorder %s46, %s62
    %p64 = scmp.eq.s32.totalorder %s17, 0
    %p65 = por %p63, %p64
    %s67 = sadd.s32 %s66, 1
    %p70 = scmp.eq.s32.totalorder %s11, 7
    %p71 = scmp.ne.s32.totalorder %s66, %s68
    %p72 = scmp.eq.s32.totalorder %s11, 0
    %p73 = por %p71, %p72
    %p74 = scmp.ne.s32.totalorder %s66, %s68
    %p75 = scmp.eq.s32.totalorder %s16, 7
    %p76 = por %p74, %p75
    %p77 = scmp.ne.s32.totalorder %s68, %s69
    %p78 = scmp.eq.s32.totalorder %s16, 0
    %p79 = por %p77, %p78
    %p80 = scmp.ne.s32.totalorder %s68, %s69
    %p81 = scmp.eq.s32.totalorder %s17, 7
    %p82 = por %p80, %p81
    %p84 = scmp.ne.s32.totalorder %s69, %s83
    %p85 = scmp.eq.s32.totalorder %s17, 0
    %p86 = por %p84, %p85
    %s88 = sadd.s32 %s87, 1
    %p91 = scmp.eq.s32.totalorder %s11, 7
    %p92 = scmp.ne.s32.totalorder %s87, %s89
    %p93 = scmp.eq.s32.totalorder %s11, 0
    %p94 = por %p92, %p93
    %p95 = scmp.ne.s32.totalorder %s87, %s89
    %p96 = scmp.eq.s32.totalorder %s16, 7
    %p97 = por %p95, %p96
    %p98 = scmp.ne.s32.totalorder %s89, %s90
    %p99 = scmp.eq.s32.totalorder %s16, 0
    %p100 = por %p98, %p99
    %p101 = scmp.ne.s32.totalorder %s89, %s90
    %p102 = scmp.eq.s32.totalorder %s17, 7
    %p103 = por %p101, %p102
    %p105 = scmp.ne.s32.totalorder %s90, %s104
    %p106 = scmp.eq.s32.totalorder %s17, 0
    %p107 = por %p105, %p106
    %s108 = ssub.s32 %s11, %s18
    %p109 = scmp.eq.s32.totalorder %s108, 0
    %s111 = sadd.s32 %s110, 1
    %s112 = scalar_select %p109, %s110, %s111
    %p115 = pneg %p109
    %p116 = scmp.eq.s32.totalorder %s11, 7
    %p117 = por %p115, %p116
    %p118 = scmp.ne.s32.totalorder %s110, %s113
    %p119 = scmp.eq.s32.totalorder %s11, 0
    %p120 = por %p118, %p119
    %p121 = scmp.ne.s32.totalorder %s110, %s113
    %p122 = scmp.eq.s32.totalorder %s16, 7
    %p123 = por %p121, %p122
    %p124 = scmp.ne.s32.totalorder %s113, %s114
    %p125 = scmp.eq.s32.totalorder %s16, 0
    %p126 = por %p124, %p125
    %p127 = scmp.ne.s32.totalorder %s113, %s114
    %p128 = scmp.eq.s32.totalorder %s17, 7
    %p129 = por %p127, %p128
    %p131 = scmp.ne.s32.totalorder %s114, %s130
    %p132 = scmp.eq.s32.totalorder %s17, 0
    %p133 = por %p131, %p132
    %p134 = scmp.le.s32.totalorder 1, %s11
    %p135 = scmp.lt.s32.totalorder %s11, 9
    %p136 = pnand %p134, %p135
    %p137 = pneg %p136
    // Predicated region
    $region9: #{self_attention_forward_batched.1} parent=5 // pred_check
      _
    $region10: #{self_attention_forward_batched.1} parent=5 // pred_check_branch
      %139 = sbr.rel (%p136) target = $region12
    $region11: #{self_attention_forward_batched.1} parent=5 // pred_region
      %s140 = ssub.s32 %s11, 1
      // Predicated region
      $region13: #{self_attention_forward_batched.1} parent=11 // pred_check
        %p141 = pneg %p32
      $region14: #{self_attention_forward_batched.1} parent=11 // pred_check_branch
        %143 = sbr.rel (%p141) target = $region16
      $region15: #{self_attention_forward_batched.1} parent=11 // pred_region
        _
      $region16: #{self_attention_forward_batched.1} parent=11 // pred_fallthru
        _
      // Predicated region
      $region17: #{self_attention_forward_batched.1} parent=11 // pred_check
        %p144 = pneg %p79
      $region18: #{self_attention_forward_batched.1} parent=11 // pred_check_branch
        %146 = sbr.rel (%p144) target = $region20
      $region19: #{self_attention_forward_batched.1} parent=11 // pred_region
        _
      $region20: #{self_attention_forward_batched.1} parent=11 // pred_fallthru
        _
      // Predicated region
      $region21: #{self_attention_forward_batched.1} parent=11 // pred_check
        %p147 = pneg %p100
      $region22: #{self_attention_forward_batched.1} parent=11 // pred_check_branch
        %149 = sbr.rel (%p147) target = $region24
      $region23: #{self_attention_forward_batched.1} parent=11 // pred_region
        _
      $region24: #{self_attention_forward_batched.1} parent=11 // pred_fallthru
        _
    $region12: #{self_attention_forward_batched.1} parent=5 // pred_fallthru
      _
    %p150 = scmp.lt.s32.totalorder %s11, 8
    // Predicated region
    $region25: #{self_attention_forward_batched.1} parent=5 // pred_check
      %p151 = pneg %p150
    $region26: #{self_attention_forward_batched.1} parent=5 // pred_check_branch
      %153 = sbr.rel (%p151) target = $region28
    $region27: #{self_attention_forward_batched.1} parent=5 // pred_region
      // Predicated region
      $region29: #{self_attention_forward_batched.1} parent=27 // pred_check
        %p154 = pneg %p52
      $region30: #{self_attention_forward_batched.1} parent=27 // pred_check_branch
        %156 = sbr.rel (%p154) target = $region32
      $region31: #{self_attention_forward_batched.1} parent=27 // pred_region
        %p157 = scmp.lt.s32.totalorder %s11, 7
        %s158 = scalar_select %p157, %s11, 7
        %s159 = smul.addr %s158, 2
        %s160 = smul.addr %s159, 8
        %s161 = scalar_lea.vmem %s1, %s160
      $region32: #{self_attention_forward_batched.1} parent=27 // pred_fallthru
        _
    $region28: #{self_attention_forward_batched.1} parent=5 // pred_fallthru
      _
    %p162 = scmp.le.s32.totalorder 1, %s11
    %p163 = scmp.lt.s32.totalorder %s11, 9
    %p164 = pnand %p162, %p163
    %p165 = pneg %p164
    // Predicated region
    $region33: #{self_attention_forward_batched.1} parent=5 // pred_check
      _
    $region34: #{self_attention_forward_batched.1} parent=5 // pred_check_branch
      %167 = sbr.rel (%p164) target = $region36
    $region35: #{self_attention_forward_batched.1} parent=5 // pred_region
      %s168 = ssub.s32 %s11, 1
      %p169 = pneg %p32
      %p170 = pneg %p29
      %p171 = scmp.lt.s32.totalorder %s16, 7
      %s172 = scalar_select %p171, %s16, 7
      %s173 = smul.addr %s172, 2
      %s174 = smul.addr %s173, 8
      %s175 = scalar_lea.vmem %s1, %s174
      %p176 = pneg %p58
      %p177 = pneg %p55
      %p178 = pneg %p79
      %p179 = pneg %p76
      %p180 = pneg %p100
      %p181 = pneg %p97
      %p182 = pneg %p126
      %p183 = pneg %p123
      %p184 = scmp.lt.s32.totalorder %s16, 7
      %s185 = scalar_select %p184, %s16, 7
      %s186 = smul.addr %s185, 2
      %s187 = smul.addr %s186, 8
      %s188 = scalar_lea.vmem %s4, %s187
      %p189 = scmp.lt.s32.totalorder %s16, 7
      %s190 = scalar_select %p189, %s16, 7
      %s191 = smul.addr %s190, 2
      %s192 = smul.addr %s191, 8
      %s193 = scalar_lea.vmem %s1, %s192
      %p194 = scmp.lt.s32.totalorder %s16, 7
      %s195 = scalar_select %p194, %s16, 7
      %s196 = smul.addr %s195, 2
      %s197 = smul.addr %s196, 8
      %s198 = scalar_lea.vmem %s4, %s197
      %v199 = vld [vmem:[%s193] sm:$0xff]
      %v200 = vld [vmem:[%s193 + $0x8] sm:$0xff]
      %v201 = vld [vmem:[%s0] sm:$0xff]
      %v202 = vld [vmem:[%s0 + $0x8] sm:$0xff]
      %v203 = vld [vmem:[%s0 + $0x10] sm:$0xff]
      %v204 = vld [vmem:[%s0 + $0x18] sm:$0xff]
      %v205 = vld [vmem:[%s0 + $0x20] sm:$0xff]
      %v206 = vld [vmem:[%s0 + $0x28] sm:$0xff]
      %vm207 = vcmask 130048
      %v209 = vsel %vm207, %v201, 0
      %v212 = vsel %vm207, %v202, 0
      %v215 = vsel %vm207, %v203, 0
      %v218 = vsel %vm207, %v204, 0
      %v221 = vsel %vm207, %v205, 0
      %v224 = vsel %vm207, %v206, 0
      %226 = vmatprep.subr.mxu0 0.0
      %227 = vmatpush1.msra.mxu0 %v199
      %228 = vmatprep.subr.mxu0 0.0
      %229 = vmatpush1.msra.mxu0 %v200
      %230 = vmatprep.subr.mxu0 0.0
      %231 = vmatpush1.msra.mxu0 0.0
      %232 = vmatprep.subr.mxu0 0.0
      %233 = vmatpush1.msra.mxu0 0.0
      %234 = vmatprep.subr.mxu0 0.0
      %235 = vmatpush1.msra.mxu0 0.0
      %236 = vmatprep.subr.mxu0 0.0
      %237 = vmatpush1.msra.mxu0 0.0
      %238 = vmatprep.subr.mxu0 0.0
      %239 = vmatpush1.msra.mxu0 0.0
      %240 = vmatprep.subr.mxu0 0.0
      %241 = vmatpush1.msra.mxu0 0.0
      %242 = vmatprep.subr.mxu0 0.0
      %243 = vmatpush1.msra.mxu0 0.0
      %244 = vmatprep.subr.mxu0 0.0
      %245 = vmatpush1.msra.mxu0 0.0
      %246 = vmatprep.subr.mxu0 0.0
      %247 = vmatpush1.msra.mxu0 0.0
      %248 = vmatprep.subr.mxu0 0.0
      %249 = vmatpush1.msra.mxu0 0.0
      %250 = vmatprep.subr.mxu0 0.0
      %251 = vmatpush1.msra.mxu0 0.0
      %252 = vmatprep.subr.mxu0 0.0
      %253 = vmatpush1.msra.mxu0 0.0
      %254 = vmatprep.subr.mxu0 0.0
      %255 = vmatpush1.msra.mxu0 0.0
      %256 = vmatprep.subr.mxu0 0.0
      %257 = vmatpush1.msra.mxu0 0.0
      %258 = vmatprep.subr.mxu0 0.0
      %259 = vmatpush1.msra.mxu0 0.0
      %260 = vmatprep.subr.mxu0 0.0
      %261 = vmatpush1.msra.mxu0 0.0
      %262 = vmatprep.subr.mxu0 0.0
      %263 = vmatpush1.msra.mxu0 0.0
      %264 = vmatprep.subr.mxu0 0.0
      %265 = vmatpush1.msra.mxu0 0.0
      %266 = vmatprep.subr.mxu0 0.0
      %267 = vmatpush1.msra.mxu0 0.0
      %268 = vmatprep.subr.mxu0 0.0
      %269 = vmatpush1.msra.mxu0 0.0
      %270 = vmatprep.subr.mxu0 0.0
      %271 = vmatpush1.msra.mxu0 0.0
      %272 = vmatprep.subr.mxu0 0.0
      %273 = vmatpush1.msra.mxu0 0.0
      %274 = vmatprep.subr.mxu0 0.0
      %275 = vmatpush1.msra.mxu0 0.0
      %276 = vmatprep.subr.mxu0 0.0
      %277 = vmatpush1.msra.mxu0 0.0
      %278 = vmatprep.subr.mxu0 0.0
      %279 = vmatpush1.msra.mxu0 0.0
      %280 = vmatprep.subr.mxu0 0.0
      %281 = vmatpush1.msra.mxu0 0.0
      %282 = vmatprep.subr.mxu0 0.0
      %283 = vmatpush1.msra.mxu0 0.0
      %284 = vmatprep.subr.mxu0 0.0
      %285 = vmatpush1.msra.mxu0 0.0
      %286 = vmatprep.subr.mxu0 0.0
      %287 = vmatpush1.msra.mxu0 0.0
      %288 = vmatprep.subr.mxu0 0.0
      %289 = vmatpush1.msra.mxu0 0.0
      %290 = vmatprep.mubr.f32.mxu0 0.0
      %291 = vmatmul.mubr.f32.gmra.mrb[0].mxu0 %v209
      %v292 = vpop.f32.mrb[0].mxu0
      %v293 = vadd.f32 0.0, %v292
      %v294 = vpop.f32.mrb[0].mxu0
      %295 = vmatprep.mubr.f32.mxu0 0.0
      %296 = vmatmul.mubr.f32.gmra.mrb[0].mxu0 %v212
      %v297 = vpop.f32.mrb[0].mxu0
      %v298 = vadd.f32 0.0, %v297
      %v299 = vpop.f32.mrb[0].mxu0
      %300 = vmatprep.mubr.f32.mxu0 0.0
      %301 = vmatmul.mubr.f32.gmra.mrb[0].mxu0 %v215
      %v302 = vpop.f32.mrb[0].mxu0
      %v303 = vadd.f32 0.0, %v302
      %v304 = vpop.f32.mrb[0].mxu0
      %305 = vmatprep.mubr.f32.mxu0 0.0
      %306 = vmatmul.mubr.f32.gmra.mrb[0].mxu0 %v218
      %v307 = vpop.f32.mrb[0].mxu0
      %v308 = vadd.f32 0.0, %v307
      %v309 = vpop.f32.mrb[0].mxu0
      %310 = vmatprep.mubr.f32.mxu0 0.0
      %311 = vmatmul.mubr.f32.gmra.mrb[0].mxu0 %v221
      %v312 = vpop.f32.mrb[0].mxu0
      %v313 = vadd.f32 0.0, %v312
      %v314 = vpop.f32.mrb[0].mxu0
      %315 = vmatprep.mubr.f32.mxu0 0.0
      %316 = vmatmul.mubr.f32.gmra.mrb[0].mxu0 %v224
      %v317 = vpop.f32.mrb[0].mxu0
      %v318 = vadd.f32 0.0, %v317
      %v319 = vpop.f32.mrb[0].mxu0
      %320 = vdwg.mxu0
      %321 = vxpose.xlu0.b32.start [1/16] %v303, 128
      %322 = vxpose.xlu0.b32.cont [2/16] %v308, 128
      %323 = vxpose.xlu0.b32.cont [3/16] 0.0, 128
      %324 = vxpose.xlu0.b32.cont [4/16] 0.0, 128
      %325 = vxpose.xlu0.b32.cont [5/16] 0.0, 128
      %326 = vxpose.xlu0.b32.cont [6/16] 0.0, 128
      %327 = vxpose.xlu0.b32.cont [7/16] 0.0, 128
      %328 = vxpose.xlu0.b32.cont [8/16] 0.0, 128
      %329 = vxpose.xlu0.b32.cont [9/16] 0.0, 128
      %330 = vxpose.xlu0.b32.cont [10/16] 0.0, 128
      %331 = vxpose.xlu0.b32.cont [11/16] 0.0, 128
      %332 = vxpose.xlu0.b32.cont [12/16] 0.0, 128
      %333 = vxpose.xlu0.b32.cont [13/16] 0.0, 128
      %334 = vxpose.xlu0.b32.cont [14/16] 0.0, 128
      %335 = vxpose.xlu0.b32.cont [15/16] 0.0, 128
      %336 = vxpose.xlu0.b32.end [16/16] 0.0, 128
      %v337 = vpop.trf.xlu0
      %v338 = vpop.trf.xlu0
      %v339 = vpop.trf.xlu0
      %v340 = vpop.trf.xlu0
      %v341 = vpop.trf.xlu0
      %v342 = vpop.trf.xlu0
      %v343 = vpop.trf.xlu0
      %v344 = vpop.trf.xlu0
      %v345 = vpop.trf.xlu0
      %v346 = vpop.trf.xlu0
      %v347 = vpop.trf.xlu0
      %v348 = vpop.trf.xlu0
      %v349 = vpop.trf.xlu0
      %v350 = vpop.trf.xlu0
      %v351 = vpop.trf.xlu0
      %v352 = vpop.trf.xlu0
      %v354 = vsel %vm207, %v337, 0
      %v357 = vsel %vm207, %v338, 0
      %359 = vmatprep.subr.mxu0 0.0
      %360 = vmatpush1.msra.mxu0 %v293
      %361 = vmatprep.subr.mxu0 0.0
      %362 = vmatpush1.msra.mxu0 %v298
      %363 = vmatprep.subr.mxu0 0.0
      %364 = vmatpush1.msra.mxu0 0.0
      %365 = vmatprep.subr.mxu0 0.0
      %366 = vmatpush1.msra.mxu0 0.0
      %367 = vmatprep.subr.mxu0 0.0
      %368 = vmatpush1.msra.mxu0 0.0
      %369 = vmatprep.subr.mxu0 0.0
      %370 = vmatpush1.msra.mxu0 0.0
      %371 = vmatprep.subr.mxu0 0.0
      %372 = vmatpush1.msra.mxu0 0.0
      %373 = vmatprep.subr.mxu0 0.0
      %374 = vmatpush1.msra.mxu0 0.0
      %375 = vmatprep.subr.mxu0 0.0
      %376 = vmatpush1.msra.mxu0 0.0
      %377 = vmatprep.subr.mxu0 0.0
      %378 = vmatpush1.msra.mxu0 0.0
      %379 = vmatprep.subr.mxu0 0.0
      %380 = vmatpush1.msra.mxu0 0.0
      %381 = vmatprep.subr.mxu0 0.0
      %382 = vmatpush1.msra.mxu0 0.0
      %383 = vmatprep.subr.mxu0 0.0
      %384 = vmatpush1.msra.mxu0 0.0
      %385 = vmatprep.subr.mxu0 0.0
      %386 = vmatpush1.msra.mxu0 0.0
      %387 = vmatprep.subr.mxu0 0.0
      %388 = vmatpush1.msra.mxu0 0.0
      %389 = vmatprep.subr.mxu0 0.0
      %390 = vmatpush1.msra.mxu0 0.0
      %391 = vmatprep.subr.mxu0 0.0
      %392 = vmatpush1.msra.mxu0 0.0
      %393 = vmatprep.subr.mxu0 0.0
      %394 = vmatpush1.msra.mxu0 0.0
      %395 = vmatprep.subr.mxu0 0.0
      %396 = vmatpush1.msra.mxu0 0.0
      %397 = vmatprep.subr.mxu0 0.0
      %398 = vmatpush1.msra.mxu0 0.0
      %399 = vmatprep.subr.mxu0 0.0
      %400 = vmatpush1.msra.mxu0 0.0
      %401 = vmatprep.subr.mxu0 0.0
      %402 = vmatpush1.msra.mxu0 0.0
      %403 = vmatprep.subr.mxu0 0.0
      %404 = vmatpush1.msra.mxu0 0.0
      %405 = vmatprep.subr.mxu0 0.0
      %406 = vmatpush1.msra.mxu0 0.0
      %407 = vmatprep.subr.mxu0 0.0
      %408 = vmatpush1.msra.mxu0 0.0
      %409 = vmatprep.subr.mxu0 0.0
      %410 = vmatpush1.msra.mxu0 0.0
      %411 = vmatprep.subr.mxu0 0.0
      %412 = vmatpush1.msra.mxu0 0.0
      %413 = vmatprep.subr.mxu0 0.0
      %414 = vmatpush1.msra.mxu0 0.0
      %415 = vmatprep.subr.mxu0 0.0
      %416 = vmatpush1.msra.mxu0 0.0
      %417 = vmatprep.subr.mxu0 0.0
      %418 = vmatpush1.msra.mxu0 0.0
      %419 = vmatprep.subr.mxu0 0.0
      %420 = vmatpush1.msra.mxu0 0.0
      %421 = vmatprep.subr.mxu0 0.0
      %422 = vmatpush1.msra.mxu0 0.0
      %423 = vmatprep.mubr.f32.mxu0 0.0
      %424 = vmatmul.mubr.f32.gmra.mrb[0].mxu0 %v354
      %v425 = vpop.f32.mrb[0].mxu0
      %v426 = vadd.f32 0.0, %v425
      %v427 = vpop.f32.mrb[0].mxu0
      %428 = vmatprep.mubr.f32.mxu0 0.0
      %429 = vmatmul.mubr.f32.gmra.mrb[0].mxu0 %v357
      %v430 = vpop.f32.mrb[0].mxu0
      %v431 = vadd.f32 0.0, %v430
      %v432 = vpop.f32.mrb[0].mxu0
      %433 = vdwg.mxu0
      %vm434 = vcmask 80896
      %v435 = vsel %vm434, %v426, -inf
      %vm436 = vcmask 74752
      %v437 = vsel %vm436, %v431, -inf
      %v438 = vmax.f32 %v435, %v437
      %v439 = vrot.slane %v438, 4
      %v440 = vmax.f32 %v438, %v439
      %v441 = vrot.slane %v440, 2
      %v442 = vmax.f32 %v440, %v441
      %v443 = vrot.slane %v442, 1
      %v444 = vmax.f32 %v442, %v443
      %v445 = vsub.f32 %v426, %v444
      %v446 = vsub.f32 %v431, %v444
      %v447 = vmul.f32 %v445, 1.442695
      %v448 = vpow.pop %v447
      %v449 = vmul.f32 %v446, 1.442695
      %v450 = vpow.pop %v449
      %v451 = vsel %vm434, %v448, 0.0
      %v452 = vsel %vm436, %v450, 0.0
      %v453 = vadd.f32 %v451, %v452
      %v454 = vrot.slane %v453, 4
      %v455 = vadd.f32 %v453, %v454
      %v456 = vrot.slane %v455, 2
      %v457 = vadd.f32 %v455, %v456
      %v458 = vrot.slane %v457, 1
      %v459 = vadd.f32 %v457, %v458
      %v460 = vrcp.pop %v459
      %v461 = vmul.f32 %v448, %v460
      %v462 = vmul.f32 %v450, %v460
      %v464 = vsel %vm434, %v313, 0
      %v467 = vsel %vm434, %v318, 0
      %vm469 = vcmask 1041408
      %v471 = vsel %vm469, %v462, 0
      %473 = vmatprep.subr.mxu0 0.0
      %474 = vmatpush1.msra.mxu0 %v461
      %475 = vmatprep.subr.mxu0 0.0
      %476 = vmatpush1.msra.mxu0 %v471
      %477 = vmatprep.subr.mxu0 0.0
      %478 = vmatpush1.msra.mxu0 0.0
      %479 = vmatprep.subr.mxu0 0.0
      %480 = vmatpush1.msra.mxu0 0.0
      %481 = vmatprep.subr.mxu0 0.0
      %482 = vmatpush1.msra.mxu0 0.0
      %483 = vmatprep.subr.mxu0 0.0
      %484 = vmatpush1.msra.mxu0 0.0
      %485 = vmatprep.subr.mxu0 0.0
      %486 = vmatpush1.msra.mxu0 0.0
      %487 = vmatprep.subr.mxu0 0.0
      %488 = vmatpush1.msra.mxu0 0.0
      %489 = vmatprep.subr.mxu0 0.0
      %490 = vmatpush1.msra.mxu0 0.0
      %491 = vmatprep.subr.mxu0 0.0
      %492 = vmatpush1.msra.mxu0 0.0
      %493 = vmatprep.subr.mxu0 0.0
      %494 = vmatpush1.msra.mxu0 0.0
      %495 = vmatprep.subr.mxu0 0.0
      %496 = vmatpush1.msra.mxu0 0.0
      %497 = vmatprep.subr.mxu0 0.0
      %498 = vmatpush1.msra.mxu0 0.0
      %499 = vmatprep.subr.mxu0 0.0
      %500 = vmatpush1.msra.mxu0 0.0
      %501 = vmatprep.subr.mxu0 0.0
      %502 = vmatpush1.msra.mxu0 0.0
      %503 = vmatprep.subr.mxu0 0.0
      %504 = vmatpush1.msra.mxu0 0.0
      %505 = vmatprep.subr.mxu0 0.0
      %506 = vmatpush1.msra.mxu0 0.0
      %507 = vmatprep.subr.mxu0 0.0
      %508 = vmatpush1.msra.mxu0 0.0
      %509 = vmatprep.subr.mxu0 0.0
      %510 = vmatpush1.msra.mxu0 0.0
      %511 = vmatprep.subr.mxu0 0.0
      %512 = vmatpush1.msra.mxu0 0.0
      %513 = vmatprep.subr.mxu0 0.0
      %514 = vmatpush1.msra.mxu0 0.0
      %515 = vmatprep.subr.mxu0 0.0
      %516 = vmatpush1.msra.mxu0 0.0
      %517 = vmatprep.subr.mxu0 0.0
      %518 = vmatpush1.msra.mxu0 0.0
      %519 = vmatprep.subr.mxu0 0.0
      %520 = vmatpush1.msra.mxu0 0.0
      %521 = vmatprep.subr.mxu0 0.0
      %522 = vmatpush1.msra.mxu0 0.0
      %523 = vmatprep.subr.mxu0 0.0
      %524 = vmatpush1.msra.mxu0 0.0
      %525 = vmatprep.subr.mxu0 0.0
      %526 = vmatpush1.msra.mxu0 0.0
      %527 = vmatprep.subr.mxu0 0.0
      %528 = vmatpush1.msra.mxu0 0.0
      %529 = vmatprep.subr.mxu0 0.0
      %530 = vmatpush1.msra.mxu0 0.0
      %531 = vmatprep.subr.mxu0 0.0
      %532 = vmatpush1.msra.mxu0 0.0
      %533 = vmatprep.subr.mxu0 0.0
      %534 = vmatpush1.msra.mxu0 0.0
      %535 = vmatprep.subr.mxu0 0.0
      %536 = vmatpush1.msra.mxu0 0.0
      %537 = vmatprep.mubr.f32.mxu0 0.0
      %538 = vmatmul.mubr.f32.gmra.mrb[0].mxu0 %v464
      %v539 = vpop.f32.mrb[0].mxu0
      %v540 = vadd.f32 0.0, %v539
      %v541 = vpop.f32.mrb[0].mxu0
      %542 = vmatprep.mubr.f32.mxu0 0.0
      %543 = vmatmul.mubr.f32.gmra.mrb[0].mxu0 %v467
      %v544 = vpop.f32.mrb[0].mxu0
      %v545 = vadd.f32 0.0, %v544
      %v546 = vpop.f32.mrb[0].mxu0
      %547 = vdwg.mxu0
      %v548 = vld [vmem:[%s2] sm:$0x1]
      %v550 = vlaneseq
      %v551 = vshrl.u32 %v550, 7
      %v552 = vsub.s32 0, %v551
      %v553 = vrot.slane %v548, %v552
      %v555 = vmul.f32 %v540, %v553
      %v556 = vmul.f32 %v545, %v553
      %v557 = vsel %vm434, %v555, 0.0
      %558 = vadd.xlane.f32.xlu0 %v557
      %v559 = vpop.xlane.xlu0 %558
      %v560 = vsel %vm434, %v556, 0.0
      %561 = vadd.xlane.f32.xlu0 %v560
      %v562 = vpop.xlane.xlu0 %561
      %s563 = sld [smem:[#allocation2]]
      %v564 = vstv %s563
      %v565 = vadd.f32 %v559, %v564
      %v566 = vadd.f32 %v562, %v564
      %vm567 = vcmask 7168
      %568 = vst.msk [vmem:[%s198] sm:$0xff] %vm567, %v565
      %569 = vst.msk [vmem:[%s198 + $0x8] sm:$0xff] %vm567, %v566
      %p570 = scmp.lt.s32.totalorder %s16, 7
      %s571 = scalar_select %p570, %s16, 7
      %s572 = smul.addr %s571, 2
      %s573 = smul.addr %s572, 8
      %s574 = scalar_lea.vmem %s4, %s573
      // Predicated region
      $region37: #{self_attention_forward_batched.1} parent=35 // pred_check
        %p575 = pneg %p123
      $region38: #{self_attention_forward_batched.1} parent=35 // pred_check_branch
        %577 = sbr.rel (%p575) target = $region40
      $region39: #{self_attention_forward_batched.1} parent=35 // pred_region
        _
      $region40: #{self_attention_forward_batched.1} parent=35 // pred_fallthru
        _
    $region36: #{self_attention_forward_batched.1} parent=5 // pred_fallthru
      _
    %p578 = scmp.le.s32.totalorder 2, %s11
    // Predicated region
    $region41: #{self_attention_forward_batched.1} parent=5 // pred_check
      %p579 = pneg %p578
    $region42: #{self_attention_forward_batched.1} parent=5 // pred_check_branch
      %581 = sbr.rel (%p579) target = $region44
    $region43: #{self_attention_forward_batched.1} parent=5 // pred_region
      %s582 = ssub.s32 %s11, 2
      // Predicated region
      $region45: #{self_attention_forward_batched.1} parent=43 // pred_check
        %p583 = pneg %p129
      $region46: #{self_attention_forward_batched.1} parent=43 // pred_check_branch
        %585 = sbr.rel (%p583) target = $region48
      $region47: #{self_attention_forward_batched.1} parent=43 // pred_region
        %p586 = scmp.lt.s32.totalorder %s17, 7
        %s587 = scalar_select %p586, %s17, 7
        %s588 = smul.addr %s587, 2
        %s589 = smul.addr %s588, 8
        %s590 = scalar_lea.vmem %s4, %s589
      $region48: #{self_attention_forward_batched.1} parent=43 // pred_fallthru
        _
    $region44: #{self_attention_forward_batched.1} parent=5 // pred_fallthru
      _
  $region6: #{self_attention_forward_batched.1} parent=0 // loop_footer
    %s15 = sadd.s32 1, %s11
  $region7: #{self_attention_forward_batched.1} parent=0 // loop_footer_branch
    %10 = sbr.rel target = $region3
  $region8: #{self_attention_forward_batched.1} parent=0 // loop_exit
    _

</llo_original>
